<compile_context>
chip_gen: v7x
topology: tpu7x:2x2x1
jax: 0.10.0
libtpu: 0.0.40
codegen_flags: <defaults>
</compile_context>

<pallas_src>
import functools

import jax
import jax.numpy as jnp
from jax import lax
from jax.experimental import pallas as pl
from jax.experimental.pallas import tpu as pltpu


def _lstm_seq_kernel(xg_ref, h0_ref, c0_ref, whh_ref,
                     out_ref, hn_ref, cn_ref):
    """Full LSTM sequence in one kernel invocation.

    xg_ref : (S, B, 4H)  precomputed x_t @ W_ih^T + (b_ih + b_hh), time-major
    h0_ref : (B, H)      initial hidden state
    c0_ref : (B, H)      initial cell state
    whh_ref: (H, 4H)     recurrent weight (transposed)
    out_ref: (S, B, H)   per-step hidden states (time-major)
    hn_ref : (B, H)      final hidden state
    cn_ref : (B, H)      final cell state
    """
    S = xg_ref.shape[0]
    H = whh_ref.shape[0]
    whh = whh_ref[...]                       # load once; (H, 4H)

    def step(t, carry):
        h, c = carry
        # gates = x_t@W_ih^T + b  (precomputed)  +  h@W_hh^T   -> (B, 4H)
        gates = xg_ref[t] + jnp.dot(h, whh, preferred_element_type=jnp.float32)

        # Full-vreg activation passes (gates is exactly one (8,128) f32 vreg),
        # then take the per-gate lane slices. PyTorch gate order: i, f, g, o.
        sig = jax.nn.sigmoid(gates)
        th = jnp.tanh(gates)
        i_g = sig[:, 0 * H:1 * H]
        f_g = sig[:, 1 * H:2 * H]
        g_g = th[:, 2 * H:3 * H]
        o_g = sig[:, 3 * H:4 * H]

        c_new = f_g * c + i_g * g_g
        h_new = o_g * jnp.tanh(c_new)

        out_ref[t] = h_new.astype(out_ref.dtype)
        return (h_new, c_new)

    h_n, c_n = lax.fori_loop(0, S, step, (h0_ref[...], c0_ref[...]),
                             unroll=True)
    hn_ref[...] = h_n.astype(hn_ref.dtype)
    cn_ref[...] = c_n.astype(cn_ref.dtype)


@jax.jit
def pencoder_forward(embedded_inputs, hidden, wih_T, whh_T, bias):
    """PEncoder.forward: (B, S, E), (h0, c0) -> (B, S, H), (hn, cn)."""
    h0, c0 = hidden                          # (1, B, H) each (n_layers=1)
    B, S, E = embedded_inputs.shape
    H = whh_T.shape[0]

    # Hoist the input projection out of the recurrence and fold the
    # (batch, seq) -> (seq, batch) permute into the matmul output layout:
    # (B, S, E) x (E, 4H) -> (S, B, 4H), plus fused bias.
    xg = jnp.einsum('bse,eg->sbg', embedded_inputs, wih_T,
                    preferred_element_type=jnp.float32) + bias   # (S, B, 4H)

    outputs, hn, cn = pl.pallas_call(
        _lstm_seq_kernel,
        out_shape=(
            jax.ShapeDtypeStruct((S, B, H), jnp.float32),   # per-step hidden
            jax.ShapeDtypeStruct((B, H), jnp.float32),      # h_n
            jax.ShapeDtypeStruct((B, H), jnp.float32),      # c_n
        ),
        grid_spec=pltpu.PrefetchScalarGridSpec(
            num_scalar_prefetch=0,
            grid=(1,),                                       # single invocation
            in_specs=[
                pl.BlockSpec((S, B, 4 * H), lambda i: (0, 0, 0)),  # xg
                pl.BlockSpec((B, H), lambda i: (0, 0)),            # h0
                pl.BlockSpec((B, H), lambda i: (0, 0)),            # c0
                pl.BlockSpec((H, 4 * H), lambda i: (0, 0)),        # W_hh^T
            ],
            out_specs=[
                pl.BlockSpec((S, B, H), lambda i: (0, 0, 0)),
                pl.BlockSpec((B, H), lambda i: (0, 0)),
                pl.BlockSpec((B, H), lambda i: (0, 0)),
            ],
        ),
        compiler_params=pltpu.CompilerParams(
            dimension_semantics=("arbitrary",)),
    )(xg, h0[0], c0[0], whh_T)

    # Back to batch-major, like outputs.permute(1, 0, 2) in PyTorch.
    return jnp.transpose(outputs, (1, 0, 2)), (hn[None], cn[None])


def init_hidden(batch_size, n_layers, hidden_dim):
    """PEncoder.init_hidden: zero (h0, c0) of shape (n_layers, B, H)."""
    h0 = jnp.zeros((n_layers, batch_size, hidden_dim), jnp.float32)
    c0 = jnp.zeros((n_layers, batch_size, hidden_dim), jnp.float32)
    return h0, c0


def _reference_lstm(x_tmajor, h0, c0, wih_T, whh_T, bias):
    """Pure-JAX reference (lax.scan) for correctness checking."""
    H = whh_T.shape[0]

    def step(carry, x_t):
        h, c = carry
        gates = x_t @ wih_T + h @ whh_T + bias
        i = jax.nn.sigmoid(gates[:, 0 * H:1 * H])
        f = jax.nn.sigmoid(gates[:, 1 * H:2 * H])
        g = jnp.tanh(gates[:, 2 * H:3 * H])
        o = jax.nn.sigmoid(gates[:, 3 * H:4 * H])
        c_new = f * c + i * g
        h_new = o * jnp.tanh(c_new)
        return (h_new, c_new), h_new

    (h_n, c_n), outs = jax.lax.scan(step, (h0[0], c0[0]), x_tmajor)
    return outs, h_n[None], c_n[None]


if __name__ == "__main__":
    # Module hyperparameters (bidir=False, n_layers=1).
    embedding_dim = 32
    hidden_dim = 32
    n_layers = 1
    B, S = 8, 8
    H, E = hidden_dim, embedding_dim

    key = jax.random.PRNGKey(0)
    k_x, k_wih, k_whh, k_bih, k_bhh = jax.random.split(key, 5)

    # Deterministic synthetic LSTM parameters (PyTorch uniform(-1/sqrt(H), 1/sqrt(H))).
    k = 1.0 / jnp.sqrt(jnp.float32(H))
    weight_ih = jax.random.uniform(k_wih, (4 * H, E), jnp.float32, -k, k)
    weight_hh = jax.random.uniform(k_whh, (4 * H, H), jnp.float32, -k, k)
    bias_ih = jax.random.uniform(k_bih, (4 * H,), jnp.float32, -k, k)
    bias_hh = jax.random.uniform(k_bhh, (4 * H,), jnp.float32, -k, k)

    wih_T = weight_ih.T                              # (E, 4H)
    whh_T = weight_hh.T                              # (H, 4H)
    bias = (bias_ih + bias_hh).reshape(1, 4 * H)     # (1, 4H)

    embedded_inputs = jax.random.normal(k_x, (B, S, E), jnp.float32)
    hidden = init_hidden(B, n_layers, H)

    outputs, (h_n, c_n) = pencoder_forward(embedded_inputs, hidden,
                                           wih_T, whh_T, bias)
    jax.block_until_ready((outputs, h_n, c_n))

    # Sanity check against pure-JAX reference.
    ref_outs, ref_hn, ref_cn = _reference_lstm(
        jnp.transpose(embedded_inputs, (1, 0, 2)), hidden[0], hidden[1],
        wih_T, whh_T, bias)
    ref_outs = jnp.transpose(ref_outs, (1, 0, 2))
    assert outputs.shape == (B, S, H)
    assert h_n.shape == (n_layers, B, H) and c_n.shape == (n_layers, B, H)
    assert jnp.allclose(outputs, ref_outs, atol=1e-5, rtol=1e-5)
    assert jnp.allclose(h_n, ref_hn, atol=1e-5, rtol=1e-5)
    assert jnp.allclose(c_n, ref_cn, atol=1e-5, rtol=1e-5)

    print("KERNEL_OK")
</pallas_src>

<mosaic_0001>
module attributes {stable_mosaic.version = 11 : i64} {
  func.func @_lstm_seq_kernel(%arg0: i32, %arg1: memref<8x8x128xf32, #tpu.memory_space<vmem>>, %arg2: memref<8x32xf32, #tpu.memory_space<vmem>>, %arg3: memref<8x32xf32, #tpu.memory_space<vmem>>, %arg4: memref<32x128xf32, #tpu.memory_space<vmem>>, %arg5: memref<8x8x32xf32, #tpu.memory_space<vmem>>, %arg6: memref<8x32xf32, #tpu.memory_space<vmem>>, %arg7: memref<8x32xf32, #tpu.memory_space<vmem>>) attributes {dimension_semantics = [#tpu.dimension_semantics<arbitrary>], iteration_bounds = array<i64: 1>, scalar_prefetch = 0 : i64, scratch_operands = 0 : i64, tpu.core_type = #tpu.core_type<tc>, window_params = [{pipeline_mode = #tpu.pipeline_mode<synchronous>, transform_indices = @transform_0, window_bounds = array<i64: 8, 8, 128>}, {pipeline_mode = #tpu.pipeline_mode<synchronous>, transform_indices = @transform_1, window_bounds = array<i64: 8, 32>}, {pipeline_mode = #tpu.pipeline_mode<synchronous>, transform_indices = @transform_2, window_bounds = array<i64: 8, 32>}, {pipeline_mode = #tpu.pipeline_mode<synchronous>, transform_indices = @transform_3, window_bounds = array<i64: 32, 128>}, {pipeline_mode = #tpu.pipeline_mode<synchronous>, transform_indices = @transform_4, window_bounds = array<i64: 8, 8, 32>}, {pipeline_mode = #tpu.pipeline_mode<synchronous>, transform_indices = @transform_5, window_bounds = array<i64: 8, 32>}, {pipeline_mode = #tpu.pipeline_mode<synchronous>, transform_indices = @transform_6, window_bounds = array<i64: 8, 32>}]} {
    %c0 = arith.constant 0 : index
    %c0_0 = arith.constant 0 : index
    %0 = vector.load %arg4[%c0, %c0_0] : memref<32x128xf32, #tpu.memory_space<vmem>>, vector<32x128xf32>
    %c0_1 = arith.constant 0 : index
    %c0_2 = arith.constant 0 : index
    %1 = vector.load %arg2[%c0_1, %c0_2] : memref<8x32xf32, #tpu.memory_space<vmem>>, vector<8x32xf32>
    %c0_3 = arith.constant 0 : index
    %c0_4 = arith.constant 0 : index
    %2 = vector.load %arg3[%c0_3, %c0_4] : memref<8x32xf32, #tpu.memory_space<vmem>>, vector<8x32xf32>
    %c0_i32 = arith.constant 0 : i32
    %3 = arith.index_cast %c0_i32 : i32 to index
    %c0_5 = arith.constant 0 : index
    %c0_6 = arith.constant 0 : index
    %4 = vector.load %arg1[%3, %c0_5, %c0_6] : memref<8x8x128xf32, #tpu.memory_space<vmem>>, vector<1x8x128xf32>
    %5 = vector.shape_cast %4 : vector<1x8x128xf32> to vector<8x128xf32>
    %cst = arith.constant dense<0.000000e+00> : vector<8x128xf32>
    %6 = tpu.matmul %1, %0, %cst {dimension_numbers = #tpu.dot_dimension_numbers<[1], [0], [0], [1], [0, 0, 1, 1], [], []>} : vector<8x32xf32>, vector<32x128xf32>, vector<8x128xf32> -> vector<8x128xf32>
    %7 = arith.addf %5, %6 : vector<8x128xf32>
    %8 = arith.negf %7 : vector<8x128xf32>
    %9 = math.exp %8 : vector<8x128xf32>
    %cst_7 = arith.constant 1.000000e+00 : f32
    %10 = vector.broadcast %cst_7 : f32 to vector<8x128xf32>
    %11 = arith.addf %10, %9 : vector<8x128xf32>
    %12 = arith.divf %10, %11 : vector<8x128xf32>
    %13 = math.tanh %7 : vector<8x128xf32>
    %14 = vector.extract_strided_slice %12 {offsets = [0, 0], sizes = [8, 32], strides = [1, 1]} : vector<8x128xf32> to vector<8x32xf32>
    %15 = vector.extract_strided_slice %12 {offsets = [0, 32], sizes = [8, 32], strides = [1, 1]} : vector<8x128xf32> to vector<8x32xf32>
    %16 = vector.extract_strided_slice %13 {offsets = [0, 64], sizes = [8, 32], strides = [1, 1]} : vector<8x128xf32> to vector<8x32xf32>
    %17 = vector.extract_strided_slice %12 {offsets = [0, 96], sizes = [8, 32], strides = [1, 1]} : vector<8x128xf32> to vector<8x32xf32>
    %18 = arith.mulf %15, %2 : vector<8x32xf32>
    %19 = arith.mulf %14, %16 : vector<8x32xf32>
    %20 = arith.addf %18, %19 : vector<8x32xf32>
    %21 = math.tanh %20 : vector<8x32xf32>
    %22 = arith.mulf %17, %21 : vector<8x32xf32>
    %23 = arith.index_cast %c0_i32 : i32 to index
    %c0_8 = arith.constant 0 : index
    %c0_9 = arith.constant 0 : index
    %24 = vector.load %arg5[%23, %c0_8, %c0_9] : memref<8x8x32xf32, #tpu.memory_space<vmem>>, vector<1x8x32xf32>
    %25 = vector.shape_cast %24 : vector<1x8x32xf32> to vector<8x32xf32>
    %26 = vector.shape_cast %22 : vector<8x32xf32> to vector<1x8x32xf32>
    tpu.vector_store %arg5[%23, %c0_8, %c0_9], %26 {strides = array<i32>} : memref<8x8x32xf32, #tpu.memory_space<vmem>>, vector<1x8x32xf32>,
    %c1_i32 = arith.constant 1 : i32
    %27 = arith.index_cast %c1_i32 : i32 to index
    %c0_10 = arith.constant 0 : index
    %c0_11 = arith.constant 0 : index
    %28 = vector.load %arg1[%27, %c0_10, %c0_11] : memref<8x8x128xf32, #tpu.memory_space<vmem>>, vector<1x8x128xf32>
    %29 = vector.shape_cast %28 : vector<1x8x128xf32> to vector<8x128xf32>
    %cst_12 = arith.constant dense<0.000000e+00> : vector<8x128xf32>
    %30 = tpu.matmul %22, %0, %cst_12 {dimension_numbers = #tpu.dot_dimension_numbers<[1], [0], [0], [1], [0, 0, 1, 1], [], []>} : vector<8x32xf32>, vector<32x128xf32>, vector<8x128xf32> -> vector<8x128xf32>
    %31 = arith.addf %29, %30 : vector<8x128xf32>
    %32 = arith.negf %31 : vector<8x128xf32>
    %33 = math.exp %32 : vector<8x128xf32>
    %cst_13 = arith.constant 1.000000e+00 : f32
    %34 = vector.broadcast %cst_13 : f32 to vector<8x128xf32>
    %35 = arith.addf %34, %33 : vector<8x128xf32>
    %36 = arith.divf %34, %35 : vector<8x128xf32>
    %37 = math.tanh %31 : vector<8x128xf32>
    %38 = vector.extract_strided_slice %36 {offsets = [0, 0], sizes = [8, 32], strides = [1, 1]} : vector<8x128xf32> to vector<8x32xf32>
    %39 = vector.extract_strided_slice %36 {offsets = [0, 32], sizes = [8, 32], strides = [1, 1]} : vector<8x128xf32> to vector<8x32xf32>
    %40 = vector.extract_strided_slice %37 {offsets = [0, 64], sizes = [8, 32], strides = [1, 1]} : vector<8x128xf32> to vector<8x32xf32>
    %41 = vector.extract_strided_slice %36 {offsets = [0, 96], sizes = [8, 32], strides = [1, 1]} : vector<8x128xf32> to vector<8x32xf32>
    %42 = arith.mulf %39, %20 : vector<8x32xf32>
    %43 = arith.mulf %38, %40 : vector<8x32xf32>
    %44 = arith.addf %42, %43 : vector<8x32xf32>
    %45 = math.tanh %44 : vector<8x32xf32>
    %46 = arith.mulf %41, %45 : vector<8x32xf32>
    %47 = arith.index_cast %c1_i32 : i32 to index
    %c0_14 = arith.constant 0 : index
    %c0_15 = arith.constant 0 : index
    %48 = vector.load %arg5[%47, %c0_14, %c0_15] : memref<8x8x32xf32, #tpu.memory_space<vmem>>, vector<1x8x32xf32>
    %49 = vector.shape_cast %48 : vector<1x8x32xf32> to vector<8x32xf32>
    %50 = vector.shape_cast %46 : vector<8x32xf32> to vector<1x8x32xf32>
    tpu.vector_store %arg5[%47, %c0_14, %c0_15], %50 {strides = array<i32>} : memref<8x8x32xf32, #tpu.memory_space<vmem>>, vector<1x8x32xf32>,
    %c2_i32 = arith.constant 2 : i32
    %51 = arith.index_cast %c2_i32 : i32 to index
    %c0_16 = arith.constant 0 : index
    %c0_17 = arith.constant 0 : index
    %52 = vector.load %arg1[%51, %c0_16, %c0_17] : memref<8x8x128xf32, #tpu.memory_space<vmem>>, vector<1x8x128xf32>
    %53 = vector.shape_cast %52 : vector<1x8x128xf32> to vector<8x128xf32>
    %cst_18 = arith.constant dense<0.000000e+00> : vector<8x128xf32>
    %54 = tpu.matmul %46, %0, %cst_18 {dimension_numbers = #tpu.dot_dimension_numbers<[1], [0], [0], [1], [0, 0, 1, 1], [], []>} : vector<8x32xf32>, vector<32x128xf32>, vector<8x128xf32> -> vector<8x128xf32>
    %55 = arith.addf %53, %54 : vector<8x128xf32>
    %56 = arith.negf %55 : vector<8x128xf32>
    %57 = math.exp %56 : vector<8x128xf32>
    %cst_19 = arith.constant 1.000000e+00 : f32
    %58 = vector.broadcast %cst_19 : f32 to vector<8x128xf32>
    %59 = arith.addf %58, %57 : vector<8x128xf32>
    %60 = arith.divf %58, %59 : vector<8x128xf32>
    %61 = math.tanh %55 : vector<8x128xf32>
    %62 = vector.extract_strided_slice %60 {offsets = [0, 0], sizes = [8, 32], strides = [1, 1]} : vector<8x128xf32> to vector<8x32xf32>
    %63 = vector.extract_strided_slice %60 {offsets = [0, 32], sizes = [8, 32], strides = [1, 1]} : vector<8x128xf32> to vector<8x32xf32>
    %64 = vector.extract_strided_slice %61 {offsets = [0, 64], sizes = [8, 32], strides = [1, 1]} : vector<8x128xf32> to vector<8x32xf32>
    %65 = vector.extract_strided_slice %60 {offsets = [0, 96], sizes = [8, 32], strides = [1, 1]} : vector<8x128xf32> to vector<8x32xf32>
    %66 = arith.mulf %63, %44 : vector<8x32xf32>
    %67 = arith.mulf %62, %64 : vector<8x32xf32>
    %68 = arith.addf %66, %67 : vector<8x32xf32>
    %69 = math.tanh %68 : vector<8x32xf32>
    %70 = arith.mulf %65, %69 : vector<8x32xf32>
    %71 = arith.index_cast %c2_i32 : i32 to index
    %c0_20 = arith.constant 0 : index
    %c0_21 = arith.constant 0 : index
    %72 = vector.load %arg5[%71, %c0_20, %c0_21] : memref<8x8x32xf32, #tpu.memory_space<vmem>>, vector<1x8x32xf32>
    %73 = vector.shape_cast %72 : vector<1x8x32xf32> to vector<8x32xf32>
    %74 = vector.shape_cast %70 : vector<8x32xf32> to vector<1x8x32xf32>
    tpu.vector_store %arg5[%71, %c0_20, %c0_21], %74 {strides = array<i32>} : memref<8x8x32xf32, #tpu.memory_space<vmem>>, vector<1x8x32xf32>,
    %c3_i32 = arith.constant 3 : i32
    %75 = arith.index_cast %c3_i32 : i32 to index
    %c0_22 = arith.constant 0 : index
    %c0_23 = arith.constant 0 : index
    %76 = vector.load %arg1[%75, %c0_22, %c0_23] : memref<8x8x128xf32, #tpu.memory_space<vmem>>, vector<1x8x128xf32>
    %77 = vector.shape_cast %76 : vector<1x8x128xf32> to vector<8x128xf32>
    %cst_24 = arith.constant dense<0.000000e+00> : vector<8x128xf32>
    %78 = tpu.matmul %70, %0, %cst_24 {dimension_numbers = #tpu.dot_dimension_numbers<[1], [0], [0], [1], [0, 0, 1, 1], [], []>} : vector<8x32xf32>, vector<32x128xf32>, vector<8x128xf32> -> vector<8x128xf32>
    %79 = arith.addf %77, %78 : vector<8x128xf32>
    %80 = arith.negf %79 : vector<8x128xf32>
    %81 = math.exp %80 : vector<8x128xf32>
    %cst_25 = arith.constant 1.000000e+00 : f32
    %82 = vector.broadcast %cst_25 : f32 to vector<8x128xf32>
    %83 = arith.addf %82, %81 : vector<8x128xf32>
    %84 = arith.divf %82, %83 : vector<8x128xf32>
    %85 = math.tanh %79 : vector<8x128xf32>
    %86 = vector.extract_strided_slice %84 {offsets = [0, 0], sizes = [8, 32], strides = [1, 1]} : vector<8x128xf32> to vector<8x32xf32>
    %87 = vector.extract_strided_slice %84 {offsets = [0, 32], sizes = [8, 32], strides = [1, 1]} : vector<8x128xf32> to vector<8x32xf32>
    %88 = vector.extract_strided_slice %85 {offsets = [0, 64], sizes = [8, 32], strides = [1, 1]} : vector<8x128xf32> to vector<8x32xf32>
    %89 = vector.extract_strided_slice %84 {offsets = [0, 96], sizes = [8, 32], strides = [1, 1]} : vector<8x128xf32> to vector<8x32xf32>
    %90 = arith.mulf %87, %68 : vector<8x32xf32>
    %91 = arith.mulf %86, %88 : vector<8x32xf32>
    %92 = arith.addf %90, %91 : vector<8x32xf32>
    %93 = math.tanh %92 : vector<8x32xf32>
    %94 = arith.mulf %89, %93 : vector<8x32xf32>
    %95 = arith.index_cast %c3_i32 : i32 to index
    %c0_26 = arith.constant 0 : index
    %c0_27 = arith.constant 0 : index
    %96 = vector.load %arg5[%95, %c0_26, %c0_27] : memref<8x8x32xf32, #tpu.memory_space<vmem>>, vector<1x8x32xf32>
    %97 = vector.shape_cast %96 : vector<1x8x32xf32> to vector<8x32xf32>
    %98 = vector.shape_cast %94 : vector<8x32xf32> to vector<1x8x32xf32>
    tpu.vector_store %arg5[%95, %c0_26, %c0_27], %98 {strides = array<i32>} : memref<8x8x32xf32, #tpu.memory_space<vmem>>, vector<1x8x32xf32>,
    %c4_i32 = arith.constant 4 : i32
    %99 = arith.index_cast %c4_i32 : i32 to index
    %c0_28 = arith.constant 0 : index
    %c0_29 = arith.constant 0 : index
    %100 = vector.load %arg1[%99, %c0_28, %c0_29] : memref<8x8x128xf32, #tpu.memory_space<vmem>>, vector<1x8x128xf32>
    %101 = vector.shape_cast %100 : vector<1x8x128xf32> to vector<8x128xf32>
    %cst_30 = arith.constant dense<0.000000e+00> : vector<8x128xf32>
    %102 = tpu.matmul %94, %0, %cst_30 {dimension_numbers = #tpu.dot_dimension_numbers<[1], [0], [0], [1], [0, 0, 1, 1], [], []>} : vector<8x32xf32>, vector<32x128xf32>, vector<8x128xf32> -> vector<8x128xf32>
    %103 = arith.addf %101, %102 : vector<8x128xf32>
    %104 = arith.negf %103 : vector<8x128xf32>
    %105 = math.exp %104 : vector<8x128xf32>
    %cst_31 = arith.constant 1.000000e+00 : f32
    %106 = vector.broadcast %cst_31 : f32 to vector<8x128xf32>
    %107 = arith.addf %106, %105 : vector<8x128xf32>
    %108 = arith.divf %106, %107 : vector<8x128xf32>
    %109 = math.tanh %103 : vector<8x128xf32>
    %110 = vector.extract_strided_slice %108 {offsets = [0, 0], sizes = [8, 32], strides = [1, 1]} : vector<8x128xf32> to vector<8x32xf32>
    %111 = vector.extract_strided_slice %108 {offsets = [0, 32], sizes = [8, 32], strides = [1, 1]} : vector<8x128xf32> to vector<8x32xf32>
    %112 = vector.extract_strided_slice %109 {offsets = [0, 64], sizes = [8, 32], strides = [1, 1]} : vector<8x128xf32> to vector<8x32xf32>
    %113 = vector.extract_strided_slice %108 {offsets = [0, 96], sizes = [8, 32], strides = [1, 1]} : vector<8x128xf32> to vector<8x32xf32>
    %114 = arith.mulf %111, %92 : vector<8x32xf32>
    %115 = arith.mulf %110, %112 : vector<8x32xf32>
    %116 = arith.addf %114, %115 : vector<8x32xf32>
    %117 = math.tanh %116 : vector<8x32xf32>
    %118 = arith.mulf %113, %117 : vector<8x32xf32>
    %119 = arith.index_cast %c4_i32 : i32 to index
    %c0_32 = arith.constant 0 : index
    %c0_33 = arith.constant 0 : index
    %120 = vector.load %arg5[%119, %c0_32, %c0_33] : memref<8x8x32xf32, #tpu.memory_space<vmem>>, vector<1x8x32xf32>
    %121 = vector.shape_cast %120 : vector<1x8x32xf32> to vector<8x32xf32>
    %122 = vector.shape_cast %118 : vector<8x32xf32> to vector<1x8x32xf32>
    tpu.vector_store %arg5[%119, %c0_32, %c0_33], %122 {strides = array<i32>} : memref<8x8x32xf32, #tpu.memory_space<vmem>>, vector<1x8x32xf32>,
    %c5_i32 = arith.constant 5 : i32
    %123 = arith.index_cast %c5_i32 : i32 to index
    %c0_34 = arith.constant 0 : index
    %c0_35 = arith.constant 0 : index
    %124 = vector.load %arg1[%123, %c0_34, %c0_35] : memref<8x8x128xf32, #tpu.memory_space<vmem>>, vector<1x8x128xf32>
    %125 = vector.shape_cast %124 : vector<1x8x128xf32> to vector<8x128xf32>
    %cst_36 = arith.constant dense<0.000000e+00> : vector<8x128xf32>
    %126 = tpu.matmul %118, %0, %cst_36 {dimension_numbers = #tpu.dot_dimension_numbers<[1], [0], [0], [1], [0, 0, 1, 1], [], []>} : vector<8x32xf32>, vector<32x128xf32>, vector<8x128xf32> -> vector<8x128xf32>
    %127 = arith.addf %125, %126 : vector<8x128xf32>
    %128 = arith.negf %127 : vector<8x128xf32>
    %129 = math.exp %128 : vector<8x128xf32>
    %cst_37 = arith.constant 1.000000e+00 : f32
    %130 = vector.broadcast %cst_37 : f32 to vector<8x128xf32>
    %131 = arith.addf %130, %129 : vector<8x128xf32>
    %132 = arith.divf %130, %131 : vector<8x128xf32>
    %133 = math.tanh %127 : vector<8x128xf32>
    %134 = vector.extract_strided_slice %132 {offsets = [0, 0], sizes = [8, 32], strides = [1, 1]} : vector<8x128xf32> to vector<8x32xf32>
    %135 = vector.extract_strided_slice %132 {offsets = [0, 32], sizes = [8, 32], strides = [1, 1]} : vector<8x128xf32> to vector<8x32xf32>
    %136 = vector.extract_strided_slice %133 {offsets = [0, 64], sizes = [8, 32], strides = [1, 1]} : vector<8x128xf32> to vector<8x32xf32>
    %137 = vector.extract_strided_slice %132 {offsets = [0, 96], sizes = [8, 32], strides = [1, 1]} : vector<8x128xf32> to vector<8x32xf32>
    %138 = arith.mulf %135, %116 : vector<8x32xf32>
    %139 = arith.mulf %134, %136 : vector<8x32xf32>
    %140 = arith.addf %138, %139 : vector<8x32xf32>
    %141 = math.tanh %140 : vector<8x32xf32>
    %142 = arith.mulf %137, %141 : vector<8x32xf32>
    %143 = arith.index_cast %c5_i32 : i32 to index
    %c0_38 = arith.constant 0 : index
    %c0_39 = arith.constant 0 : index
    %144 = vector.load %arg5[%143, %c0_38, %c0_39] : memref<8x8x32xf32, #tpu.memory_space<vmem>>, vector<1x8x32xf32>
    %145 = vector.shape_cast %144 : vector<1x8x32xf32> to vector<8x32xf32>
    %146 = vector.shape_cast %142 : vector<8x32xf32> to vector<1x8x32xf32>
    tpu.vector_store %arg5[%143, %c0_38, %c0_39], %146 {strides = array<i32>} : memref<8x8x32xf32, #tpu.memory_space<vmem>>, vector<1x8x32xf32>,
    %c6_i32 = arith.constant 6 : i32
    %147 = arith.index_cast %c6_i32 : i32 to index
    %c0_40 = arith.constant 0 : index
    %c0_41 = arith.constant 0 : index
    %148 = vector.load %arg1[%147, %c0_40, %c0_41] : memref<8x8x128xf32, #tpu.memory_space<vmem>>, vector<1x8x128xf32>
    %149 = vector.shape_cast %148 : vector<1x8x128xf32> to vector<8x128xf32>
    %cst_42 = arith.constant dense<0.000000e+00> : vector<8x128xf32>
    %150 = tpu.matmul %142, %0, %cst_42 {dimension_numbers = #tpu.dot_dimension_numbers<[1], [0], [0], [1], [0, 0, 1, 1], [], []>} : vector<8x32xf32>, vector<32x128xf32>, vector<8x128xf32> -> vector<8x128xf32>
    %151 = arith.addf %149, %150 : vector<8x128xf32>
    %152 = arith.negf %151 : vector<8x128xf32>
    %153 = math.exp %152 : vector<8x128xf32>
    %cst_43 = arith.constant 1.000000e+00 : f32
    %154 = vector.broadcast %cst_43 : f32 to vector<8x128xf32>
    %155 = arith.addf %154, %153 : vector<8x128xf32>
    %156 = arith.divf %154, %155 : vector<8x128xf32>
    %157 = math.tanh %151 : vector<8x128xf32>
    %158 = vector.extract_strided_slice %156 {offsets = [0, 0], sizes = [8, 32], strides = [1, 1]} : vector<8x128xf32> to vector<8x32xf32>
    %159 = vector.extract_strided_slice %156 {offsets = [0, 32], sizes = [8, 32], strides = [1, 1]} : vector<8x128xf32> to vector<8x32xf32>
    %160 = vector.extract_strided_slice %157 {offsets = [0, 64], sizes = [8, 32], strides = [1, 1]} : vector<8x128xf32> to vector<8x32xf32>
    %161 = vector.extract_strided_slice %156 {offsets = [0, 96], sizes = [8, 32], strides = [1, 1]} : vector<8x128xf32> to vector<8x32xf32>
    %162 = arith.mulf %159, %140 : vector<8x32xf32>
    %163 = arith.mulf %158, %160 : vector<8x32xf32>
    %164 = arith.addf %162, %163 : vector<8x32xf32>
    %165 = math.tanh %164 : vector<8x32xf32>
    %166 = arith.mulf %161, %165 : vector<8x32xf32>
    %167 = arith.index_cast %c6_i32 : i32 to index
    %c0_44 = arith.constant 0 : index
    %c0_45 = arith.constant 0 : index
    %168 = vector.load %arg5[%167, %c0_44, %c0_45] : memref<8x8x32xf32, #tpu.memory_space<vmem>>, vector<1x8x32xf32>
    %169 = vector.shape_cast %168 : vector<1x8x32xf32> to vector<8x32xf32>
    %170 = vector.shape_cast %166 : vector<8x32xf32> to vector<1x8x32xf32>
    tpu.vector_store %arg5[%167, %c0_44, %c0_45], %170 {strides = array<i32>} : memref<8x8x32xf32, #tpu.memory_space<vmem>>, vector<1x8x32xf32>,
    %c7_i32 = arith.constant 7 : i32
    %171 = arith.index_cast %c7_i32 : i32 to index
    %c0_46 = arith.constant 0 : index
    %c0_47 = arith.constant 0 : index
    %172 = vector.load %arg1[%171, %c0_46, %c0_47] : memref<8x8x128xf32, #tpu.memory_space<vmem>>, vector<1x8x128xf32>
    %173 = vector.shape_cast %172 : vector<1x8x128xf32> to vector<8x128xf32>
    %cst_48 = arith.constant dense<0.000000e+00> : vector<8x128xf32>
    %174 = tpu.matmul %166, %0, %cst_48 {dimension_numbers = #tpu.dot_dimension_numbers<[1], [0], [0], [1], [0, 0, 1, 1], [], []>} : vector<8x32xf32>, vector<32x128xf32>, vector<8x128xf32> -> vector<8x128xf32>
    %175 = arith.addf %173, %174 : vector<8x128xf32>
    %176 = arith.negf %175 : vector<8x128xf32>
    %177 = math.exp %176 : vector<8x128xf32>
    %cst_49 = arith.constant 1.000000e+00 : f32
    %178 = vector.broadcast %cst_49 : f32 to vector<8x128xf32>
    %179 = arith.addf %178, %177 : vector<8x128xf32>
    %180 = arith.divf %178, %179 : vector<8x128xf32>
    %181 = math.tanh %175 : vector<8x128xf32>
    %182 = vector.extract_strided_slice %180 {offsets = [0, 0], sizes = [8, 32], strides = [1, 1]} : vector<8x128xf32> to vector<8x32xf32>
    %183 = vector.extract_strided_slice %180 {offsets = [0, 32], sizes = [8, 32], strides = [1, 1]} : vector<8x128xf32> to vector<8x32xf32>
    %184 = vector.extract_strided_slice %181 {offsets = [0, 64], sizes = [8, 32], strides = [1, 1]} : vector<8x128xf32> to vector<8x32xf32>
    %185 = vector.extract_strided_slice %180 {offsets = [0, 96], sizes = [8, 32], strides = [1, 1]} : vector<8x128xf32> to vector<8x32xf32>
    %186 = arith.mulf %183, %164 : vector<8x32xf32>
    %187 = arith.mulf %182, %184 : vector<8x32xf32>
    %188 = arith.addf %186, %187 : vector<8x32xf32>
    %189 = math.tanh %188 : vector<8x32xf32>
    %190 = arith.mulf %185, %189 : vector<8x32xf32>
    %191 = arith.index_cast %c7_i32 : i32 to index
    %c0_50 = arith.constant 0 : index
    %c0_51 = arith.constant 0 : index
    %192 = vector.load %arg5[%191, %c0_50, %c0_51] : memref<8x8x32xf32, #tpu.memory_space<vmem>>, vector<1x8x32xf32>
    %193 = vector.shape_cast %192 : vector<1x8x32xf32> to vector<8x32xf32>
    %194 = vector.shape_cast %190 : vector<8x32xf32> to vector<1x8x32xf32>
    tpu.vector_store %arg5[%191, %c0_50, %c0_51], %194 {strides = array<i32>} : memref<8x8x32xf32, #tpu.memory_space<vmem>>, vector<1x8x32xf32>,
    %c8_i32 = arith.constant 8 : i32
    %c0_52 = arith.constant 0 : index
    %c0_53 = arith.constant 0 : index
    %195 = vector.load %arg6[%c0_52, %c0_53] : memref<8x32xf32, #tpu.memory_space<vmem>>, vector<8x32xf32>
    tpu.vector_store %arg6[%c0_52, %c0_53], %190 {strides = array<i32>} : memref<8x32xf32, #tpu.memory_space<vmem>>, vector<8x32xf32>,
    %c0_54 = arith.constant 0 : index
    %c0_55 = arith.constant 0 : index
    %196 = vector.load %arg7[%c0_54, %c0_55] : memref<8x32xf32, #tpu.memory_space<vmem>>, vector<8x32xf32>
    tpu.vector_store %arg7[%c0_54, %c0_55], %188 {strides = array<i32>} : memref<8x32xf32, #tpu.memory_space<vmem>>, vector<8x32xf32>,
    return
  }
  func.func @transform_0(%arg0: i32) -> (i32, i32, i32) {
    %c0_i32 = arith.constant 0 : i32
    %c0_i32_0 = arith.constant 0 : i32
    %c0_i32_1 = arith.constant 0 : i32
    %c0_i32_2 = arith.constant 0 : i32
    return %c0_i32, %c0_i32_0, %c0_i32_1 : i32, i32, i32
  }
  func.func @transform_1(%arg0: i32) -> (i32, i32) {
    %c0_i32 = arith.constant 0 : i32
    %c0_i32_0 = arith.constant 0 : i32
    %c0_i32_1 = arith.constant 0 : i32
    return %c0_i32, %c0_i32_0 : i32, i32
  }
  func.func @transform_2(%arg0: i32) -> (i32, i32) {
    %c0_i32 = arith.constant 0 : i32
    %c0_i32_0 = arith.constant 0 : i32
    %c0_i32_1 = arith.constant 0 : i32
    return %c0_i32, %c0_i32_0 : i32, i32
  }
  func.func @transform_3(%arg0: i32) -> (i32, i32) {
    %c0_i32 = arith.constant 0 : i32
    %c0_i32_0 = arith.constant 0 : i32
    %c0_i32_1 = arith.constant 0 : i32
    return %c0_i32, %c0_i32_0 : i32, i32
  }
  func.func @transform_4(%arg0: i32) -> (i32, i32, i32) {
    %c0_i32 = arith.constant 0 : i32
    %c0_i32_0 = arith.constant 0 : i32
    %c0_i32_1 = arith.constant 0 : i32
    %c0_i32_2 = arith.constant 0 : i32
    return %c0_i32, %c0_i32_0, %c0_i32_1 : i32, i32, i32
  }
  func.func @transform_5(%arg0: i32) -> (i32, i32) {
    %c0_i32 = arith.constant 0 : i32
    %c0_i32_0 = arith.constant 0 : i32
    %c0_i32_1 = arith.constant 0 : i32
    return %c0_i32, %c0_i32_0 : i32, i32
  }
  func.func @transform_6(%arg0: i32) -> (i32, i32) {
    %c0_i32 = arith.constant 0 : i32
    %c0_i32_0 = arith.constant 0 : i32
    %c0_i32_1 = arith.constant 0 : i32
    return %c0_i32, %c0_i32_0 : i32, i32
  }
}

</mosaic_0001>

<llo_original>
// kernel: pencoder_forward.1
$region0: #{pencoder_forward.1}
  #allocation0 [shape = 'u32[]', space=smem, size = 0x4, offset = 0x4, fixed_abs, tag = 'smem constant byte address 0x4 - core index']
  #allocation1 [shape = 'u32[144,128]{1,0:T(1,128)}', space=vmem, size = 0x12000, scoped, tag = 'internal scratch']
  %s0 = inlined_call_operand.vmem [shape: f32[8,8,128], index: 0, kind: input, shape index: {}]
  %s1 = inlined_call_operand.vmem [shape: f32[8,32], index: 1, kind: input, shape index: {}]
  %s2 = inlined_call_operand.vmem [shape: f32[8,32], index: 2, kind: input, shape index: {}]
  %s3 = inlined_call_operand.vmem [shape: f32[32,128], index: 3, kind: input, shape index: {}]
  %s4 = inlined_call_operand.vmem [shape: f32[8,8,32], index: 4, kind: output, shape index: {0}]
  %s5 = inlined_call_operand.hbm [shape: f32[8,32], index: 5, kind: output, shape index: {1}]
  %s6 = inlined_call_operand.hbm [shape: f32[8,32], index: 6, kind: output, shape index: {2}]
  %7 = xla_tuple %s4, %s5, %s6
  %s8 = sld [smem:[#allocation0]]
  $region42: #{pencoder_forward.1} parent=0
    _
  %s10 = ssub.s32 1, %s8
  %s11 = scalar_select 0, %s10, %s8
  $region1: #{pencoder_forward.1} parent=0
    #allocation2 [shape = 'u8[4096]{0}', space=vmem, size = 0x1000, scoped, tag = 'output window, operand 1, single buffered']
    #allocation3 [shape = 's32[1]{0}', space=sflag, size = 0x4, scoped, tag = 'scoped memory for pencoder_forward.1']
    #allocation4 [shape = 'u8[4096]{0}', space=vmem, size = 0x1000, scoped, tag = 'output window, operand 2, single buffered']
    #allocation5 [shape = 's32[1]{0}', space=sflag, size = 0x4, scoped, tag = 'scoped memory for pencoder_forward.1']
    %12 = vsyncpa [#allocation3], 0
    %13 = vsyncpa [#allocation5], 0
    // Predicated region
    $region2: #{pencoder_forward.1} parent=1 // pred_check
      _
    $region3: #{pencoder_forward.1} parent=1 // pred_check_branch
      %15 = sbr.rel (0) target = $region5
    $region4: #{pencoder_forward.1} parent=1 // pred_region
      _
    $region5: #{pencoder_forward.1} parent=1 // pred_fallthru
      _
    // Predicated region
    $region6: #{pencoder_forward.1} parent=1 // pred_check
      _
    $region7: #{pencoder_forward.1} parent=1 // pred_check_branch
      %17 = sbr.rel (0) target = $region9
    $region8: #{pencoder_forward.1} parent=1 // pred_region
      _
    $region9: #{pencoder_forward.1} parent=1 // pred_fallthru
      _
    // Predicated region
    $region10: #{pencoder_forward.1} parent=1 // pred_check
      _
    $region11: #{pencoder_forward.1} parent=1 // pred_check_branch
      %19 = sbr.rel (0) target = $region13
    $region12: #{pencoder_forward.1} parent=1 // pred_region
      _
    $region13: #{pencoder_forward.1} parent=1 // pred_fallthru
      _
    // Predicated region
    $region14: #{pencoder_forward.1} parent=1 // pred_check
      _
    $region15: #{pencoder_forward.1} parent=1 // pred_check_branch
      %21 = sbr.rel (0) target = $region17
    $region16: #{pencoder_forward.1} parent=1 // pred_region
      _
    $region17: #{pencoder_forward.1} parent=1 // pred_fallthru
      _
    %v22 = vld [vmem:[%s3] sm:$0xff]
    %v23 = vld [vmem:[%s3 + $0x8] sm:$0xff]
    %v24 = vld [vmem:[%s3 + $0x10] sm:$0xff]
    %v25 = vld [vmem:[%s3 + $0x18] sm:$0xff]
    %v26 = vld [vmem:[%s1] sm:$0xff]
    %v27 = vld [vmem:[%s2] sm:$0xff]
    %v28 = vld [vmem:[%s0] sm:$0xff]
    %vm29 = vcmask 261120
    %v31 = vsel %vm29, %v26, 0
    %33 = vmatprep.subr.mxu0 0.0
    %34 = vmatpush1.msra.mxu0 %v22
    %35 = vmatprep.subr.mxu0 0.0
    %36 = vmatpush1.msra.mxu0 %v23
    %37 = vmatprep.subr.mxu0 0.0
    %38 = vmatpush1.msra.mxu0 %v24
    %39 = vmatprep.subr.mxu0 0.0
    %40 = vmatpush1.msra.mxu0 %v25
    %41 = vmatprep.subr.mxu0 0.0
    %42 = vmatpush1.msra.mxu0 0.0
    %43 = vmatprep.subr.mxu0 0.0
    %44 = vmatpush1.msra.mxu0 0.0
    %45 = vmatprep.subr.mxu0 0.0
    %46 = vmatpush1.msra.mxu0 0.0
    %47 = vmatprep.subr.mxu0 0.0
    %48 = vmatpush1.msra.mxu0 0.0
    %49 = vmatprep.subr.mxu0 0.0
    %50 = vmatpush1.msra.mxu0 0.0
    %51 = vmatprep.subr.mxu0 0.0
    %52 = vmatpush1.msra.mxu0 0.0
    %53 = vmatprep.subr.mxu0 0.0
    %54 = vmatpush1.msra.mxu0 0.0
    %55 = vmatprep.subr.mxu0 0.0
    %56 = vmatpush1.msra.mxu0 0.0
    %57 = vmatprep.subr.mxu0 0.0
    %58 = vmatpush1.msra.mxu0 0.0
    %59 = vmatprep.subr.mxu0 0.0
    %60 = vmatpush1.msra.mxu0 0.0
    %61 = vmatprep.subr.mxu0 0.0
    %62 = vmatpush1.msra.mxu0 0.0
    %63 = vmatprep.subr.mxu0 0.0
    %64 = vmatpush1.msra.mxu0 0.0
    %65 = vmatprep.subr.mxu0 0.0
    %66 = vmatpush1.msra.mxu0 0.0
    %67 = vmatprep.subr.mxu0 0.0
    %68 = vmatpush1.msra.mxu0 0.0
    %69 = vmatprep.subr.mxu0 0.0
    %70 = vmatpush1.msra.mxu0 0.0
    %71 = vmatprep.subr.mxu0 0.0
    %72 = vmatpush1.msra.mxu0 0.0
    %73 = vmatprep.subr.mxu0 0.0
    %74 = vmatpush1.msra.mxu0 0.0
    %75 = vmatprep.subr.mxu0 0.0
    %76 = vmatpush1.msra.mxu0 0.0
    %77 = vmatprep.subr.mxu0 0.0
    %78 = vmatpush1.msra.mxu0 0.0
    %79 = vmatprep.subr.mxu0 0.0
    %80 = vmatpush1.msra.mxu0 0.0
    %81 = vmatprep.subr.mxu0 0.0
    %82 = vmatpush1.msra.mxu0 0.0
    %83 = vmatprep.subr.mxu0 0.0
    %84 = vmatpush1.msra.mxu0 0.0
    %85 = vmatprep.subr.mxu0 0.0
    %86 = vmatpush1.msra.mxu0 0.0
    %87 = vmatprep.subr.mxu0 0.0
    %88 = vmatpush1.msra.mxu0 0.0
    %89 = vmatprep.subr.mxu0 0.0
    %90 = vmatpush1.msra.mxu0 0.0
    %91 = vmatprep.subr.mxu0 0.0
    %92 = vmatpush1.msra.mxu0 0.0
    %93 = vmatprep.subr.mxu0 0.0
    %94 = vmatpush1.msra.mxu0 0.0
    %95 = vmatprep.subr.mxu0 0.0
    %96 = vmatpush1.msra.mxu0 0.0
    %97 = vmatprep.mubr.f32.mxu0 0.0
    %98 = vmatmul.mubr.f32.gmra.mrb[0].mxu0 %v31
    %v99 = vpop.f32.mrb[0].mxu0
    %v100 = vadd.f32 0.0, %v99
    %v101 = vpop.f32.mrb[0].mxu0
    %102 = vdwg.mxu0
    %v103 = vadd.f32 %v28, %v100
    %v104 = vxor.u32 %v103, 2147483648
    %v105 = vmul.f32 %v104, 1.442695
    %v106 = vpow.pop %v105
    %v107 = vadd.f32 %v106, 1.0
    %v108 = vrcp.pop %v107
    %v109 = vmul.f32 1.0, %v108
    %v110 = vtanh.pop %v103
    %112 = vrot.lane.b32.xlu0 %v27, 32
    %v113 = vpop.permute.xlu0 %112
    %v115 = vmul.f32 %v109, %v113
    %117 = vrot.lane.b32.xlu0 %v110, 64
    %v118 = vpop.permute.xlu0 %117
    %v120 = vmul.f32 %v109, %v118
    %122 = vrot.lane.b32.xlu0 %v120, 32
    %v123 = vpop.permute.xlu0 %122
    %v125 = vadd.f32 %v115, %v123
    %v126 = vtanh.pop %v125
    %128 = vrot.lane.b32.xlu0 %v126, 64
    %v129 = vpop.permute.xlu0 %128
    %v131 = vmul.f32 %v109, %v129
    %133 = vrot.lane.b32.xlu0 %v131, 32
    %v134 = vpop.permute.xlu0 %133
    %136 = vst.msk [vmem:[%s4] sm:$0xff] %vm29, %v134
    %s137 = scalar_lea.vmem %s0, 8
    %v138 = vld [vmem:[%s137] sm:$0xff]
    %v139 = vsel %vm29, %v134, 0
    %141 = vmatprep.subr.mxu0 0.0
    %142 = vmatpush1.msra.mxu0 %v22
    %143 = vmatprep.subr.mxu0 0.0
    %144 = vmatpush1.msra.mxu0 %v23
    %145 = vmatprep.subr.mxu0 0.0
    %146 = vmatpush1.msra.mxu0 %v24
    %147 = vmatprep.subr.mxu0 0.0
    %148 = vmatpush1.msra.mxu0 %v25
    %149 = vmatprep.subr.mxu0 0.0
    %150 = vmatpush1.msra.mxu0 0.0
    %151 = vmatprep.subr.mxu0 0.0
    %152 = vmatpush1.msra.mxu0 0.0
    %153 = vmatprep.subr.mxu0 0.0
    %154 = vmatpush1.msra.mxu0 0.0
    %155 = vmatprep.subr.mxu0 0.0
    %156 = vmatpush1.msra.mxu0 0.0
    %157 = vmatprep.subr.mxu0 0.0
    %158 = vmatpush1.msra.mxu0 0.0
    %159 = vmatprep.subr.mxu0 0.0
    %160 = vmatpush1.msra.mxu0 0.0
    %161 = vmatprep.subr.mxu0 0.0
    %162 = vmatpush1.msra.mxu0 0.0
    %163 = vmatprep.subr.mxu0 0.0
    %164 = vmatpush1.msra.mxu0 0.0
    %165 = vmatprep.subr.mxu0 0.0
    %166 = vmatpush1.msra.mxu0 0.0
    %167 = vmatprep.subr.mxu0 0.0
    %168 = vmatpush1.msra.mxu0 0.0
    %169 = vmatprep.subr.mxu0 0.0
    %170 = vmatpush1.msra.mxu0 0.0
    %171 = vmatprep.subr.mxu0 0.0
    %172 = vmatpush1.msra.mxu0 0.0
    %173 = vmatprep.subr.mxu0 0.0
    %174 = vmatpush1.msra.mxu0 0.0
    %175 = vmatprep.subr.mxu0 0.0
    %176 = vmatpush1.msra.mxu0 0.0
    %177 = vmatprep.subr.mxu0 0.0
    %178 = vmatpush1.msra.mxu0 0.0
    %179 = vmatprep.subr.mxu0 0.0
    %180 = vmatpush1.msra.mxu0 0.0
    %181 = vmatprep.subr.mxu0 0.0
    %182 = vmatpush1.msra.mxu0 0.0
    %183 = vmatprep.subr.mxu0 0.0
    %184 = vmatpush1.msra.mxu0 0.0
    %185 = vmatprep.subr.mxu0 0.0
    %186 = vmatpush1.msra.mxu0 0.0
    %187 = vmatprep.subr.mxu0 0.0
    %188 = vmatpush1.msra.mxu0 0.0
    %189 = vmatprep.subr.mxu0 0.0
    %190 = vmatpush1.msra.mxu0 0.0
    %191 = vmatprep.subr.mxu0 0.0
    %192 = vmatpush1.msra.mxu0 0.0
    %193 = vmatprep.subr.mxu0 0.0
    %194 = vmatpush1.msra.mxu0 0.0
    %195 = vmatprep.subr.mxu0 0.0
    %196 = vmatpush1.msra.mxu0 0.0
    %197 = vmatprep.subr.mxu0 0.0
    %198 = vmatpush1.msra.mxu0 0.0
    %199 = vmatprep.subr.mxu0 0.0
    %200 = vmatpush1.msra.mxu0 0.0
    %201 = vmatprep.subr.mxu0 0.0
    %202 = vmatpush1.msra.mxu0 0.0
    %203 = vmatprep.subr.mxu0 0.0
    %204 = vmatpush1.msra.mxu0 0.0
    %205 = vmatprep.mubr.f32.mxu0 0.0
    %206 = vmatmul.mubr.f32.gmra.mrb[0].mxu0 %v139
    %v207 = vpop.f32.mrb[0].mxu0
    %v208 = vadd.f32 0.0, %v207
    %v209 = vpop.f32.mrb[0].mxu0
    %210 = vdwg.mxu0
    %v211 = vadd.f32 %v138, %v208
    %v212 = vxor.u32 %v211, 2147483648
    %v213 = vmul.f32 %v212, 1.442695
    %v214 = vpow.pop %v213
    %v215 = vadd.f32 %v214, 1.0
    %v216 = vrcp.pop %v215
    %v217 = vmul.f32 1.0, %v216
    %v218 = vtanh.pop %v211
    %v219 = vmul.f32 %v217, %v125
    %221 = vrot.lane.b32.xlu0 %v218, 64
    %v222 = vpop.permute.xlu0 %221
    %v224 = vmul.f32 %v217, %v222
    %226 = vrot.lane.b32.xlu0 %v224, 32
    %v227 = vpop.permute.xlu0 %226
    %v229 = vadd.f32 %v219, %v227
    %v230 = vtanh.pop %v229
    %232 = vrot.lane.b32.xlu0 %v230, 64
    %v233 = vpop.permute.xlu0 %232
    %v235 = vmul.f32 %v217, %v233
    %237 = vrot.lane.b32.xlu0 %v235, 32
    %v238 = vpop.permute.xlu0 %237
    %s240 = scalar_lea.vmem %s4, 8
    %241 = vst.msk [vmem:[%s240] sm:$0xff] %vm29, %v238
    %s242 = scalar_lea.vmem %s0, 16
    %v243 = vld [vmem:[%s242] sm:$0xff]
    %v244 = vsel %vm29, %v238, 0
    %246 = vmatprep.subr.mxu0 0.0
    %247 = vmatpush1.msra.mxu0 %v22
    %248 = vmatprep.subr.mxu0 0.0
    %249 = vmatpush1.msra.mxu0 %v23
    %250 = vmatprep.subr.mxu0 0.0
    %251 = vmatpush1.msra.mxu0 %v24
    %252 = vmatprep.subr.mxu0 0.0
    %253 = vmatpush1.msra.mxu0 %v25
    %254 = vmatprep.subr.mxu0 0.0
    %255 = vmatpush1.msra.mxu0 0.0
    %256 = vmatprep.subr.mxu0 0.0
    %257 = vmatpush1.msra.mxu0 0.0
    %258 = vmatprep.subr.mxu0 0.0
    %259 = vmatpush1.msra.mxu0 0.0
    %260 = vmatprep.subr.mxu0 0.0
    %261 = vmatpush1.msra.mxu0 0.0
    %262 = vmatprep.subr.mxu0 0.0
    %263 = vmatpush1.msra.mxu0 0.0
    %264 = vmatprep.subr.mxu0 0.0
    %265 = vmatpush1.msra.mxu0 0.0
    %266 = vmatprep.subr.mxu0 0.0
    %267 = vmatpush1.msra.mxu0 0.0
    %268 = vmatprep.subr.mxu0 0.0
    %269 = vmatpush1.msra.mxu0 0.0
    %270 = vmatprep.subr.mxu0 0.0
    %271 = vmatpush1.msra.mxu0 0.0
    %272 = vmatprep.subr.mxu0 0.0
    %273 = vmatpush1.msra.mxu0 0.0
    %274 = vmatprep.subr.mxu0 0.0
    %275 = vmatpush1.msra.mxu0 0.0
    %276 = vmatprep.subr.mxu0 0.0
    %277 = vmatpush1.msra.mxu0 0.0
    %278 = vmatprep.subr.mxu0 0.0
    %279 = vmatpush1.msra.mxu0 0.0
    %280 = vmatprep.subr.mxu0 0.0
    %281 = vmatpush1.msra.mxu0 0.0
    %282 = vmatprep.subr.mxu0 0.0
    %283 = vmatpush1.msra.mxu0 0.0
    %284 = vmatprep.subr.mxu0 0.0
    %285 = vmatpush1.msra.mxu0 0.0
    %286 = vmatprep.subr.mxu0 0.0
    %287 = vmatpush1.msra.mxu0 0.0
    %288 = vmatprep.subr.mxu0 0.0
    %289 = vmatpush1.msra.mxu0 0.0
    %290 = vmatprep.subr.mxu0 0.0
    %291 = vmatpush1.msra.mxu0 0.0
    %292 = vmatprep.subr.mxu0 0.0
    %293 = vmatpush1.msra.mxu0 0.0
    %294 = vmatprep.subr.mxu0 0.0
    %295 = vmatpush1.msra.mxu0 0.0
    %296 = vmatprep.subr.mxu0 0.0
    %297 = vmatpush1.msra.mxu0 0.0
    %298 = vmatprep.subr.mxu0 0.0
    %299 = vmatpush1.msra.mxu0 0.0
    %300 = vmatprep.subr.mxu0 0.0
    %301 = vmatpush1.msra.mxu0 0.0
    %302 = vmatprep.subr.mxu0 0.0
    %303 = vmatpush1.msra.mxu0 0.0
    %304 = vmatprep.subr.mxu0 0.0
    %305 = vmatpush1.msra.mxu0 0.0
    %306 = vmatprep.subr.mxu0 0.0
    %307 = vmatpush1.msra.mxu0 0.0
    %308 = vmatprep.subr.mxu0 0.0
    %309 = vmatpush1.msra.mxu0 0.0
    %310 = vmatprep.mubr.f32.mxu0 0.0
    %311 = vmatmul.mubr.f32.gmra.mrb[0].mxu0 %v244
    %v312 = vpop.f32.mrb[0].mxu0
    %v313 = vadd.f32 0.0, %v312
    %v314 = vpop.f32.mrb[0].mxu0
    %315 = vdwg.mxu0
    %v316 = vadd.f32 %v243, %v313
    %v317 = vxor.u32 %v316, 2147483648
    %v318 = vmul.f32 %v317, 1.442695
    %v319 = vpow.pop %v318
    %v320 = vadd.f32 %v319, 1.0
    %v321 = vrcp.pop %v320
    %v322 = vmul.f32 1.0, %v321
    %v323 = vtanh.pop %v316
    %v324 = vmul.f32 %v322, %v229
    %326 = vrot.lane.b32.xlu0 %v323, 64
    %v327 = vpop.permute.xlu0 %326
    %v329 = vmul.f32 %v322, %v327
    %331 = vrot.lane.b32.xlu0 %v329, 32
    %v332 = vpop.permute.xlu0 %331
    %v334 = vadd.f32 %v324, %v332
    %v335 = vtanh.pop %v334
    %337 = vrot.lane.b32.xlu0 %v335, 64
    %v338 = vpop.permute.xlu0 %337
    %v340 = vmul.f32 %v322, %v338
    %342 = vrot.lane.b32.xlu0 %v340, 32
    %v343 = vpop.permute.xlu0 %342
    %s345 = scalar_lea.vmem %s4, 16
    %346 = vst.msk [vmem:[%s345] sm:$0xff] %vm29, %v343
    %s347 = scalar_lea.vmem %s0, 24
    %v348 = vld [vmem:[%s347] sm:$0xff]
    %v349 = vsel %vm29, %v343, 0
    %351 = vmatprep.subr.mxu0 0.0
    %352 = vmatpush1.msra.mxu0 %v22
    %353 = vmatprep.subr.mxu0 0.0
    %354 = vmatpush1.msra.mxu0 %v23
    %355 = vmatprep.subr.mxu0 0.0
    %356 = vmatpush1.msra.mxu0 %v24
    %357 = vmatprep.subr.mxu0 0.0
    %358 = vmatpush1.msra.mxu0 %v25
    %359 = vmatprep.subr.mxu0 0.0
    %360 = vmatpush1.msra.mxu0 0.0
    %361 = vmatprep.subr.mxu0 0.0
    %362 = vmatpush1.msra.mxu0 0.0
    %363 = vmatprep.subr.mxu0 0.0
    %364 = vmatpush1.msra.mxu0 0.0
    %365 = vmatprep.subr.mxu0 0.0
    %366 = vmatpush1.msra.mxu0 0.0
    %367 = vmatprep.subr.mxu0 0.0
    %368 = vmatpush1.msra.mxu0 0.0
    %369 = vmatprep.subr.mxu0 0.0
    %370 = vmatpush1.msra.mxu0 0.0
    %371 = vmatprep.subr.mxu0 0.0
    %372 = vmatpush1.msra.mxu0 0.0
    %373 = vmatprep.subr.mxu0 0.0
    %374 = vmatpush1.msra.mxu0 0.0
    %375 = vmatprep.subr.mxu0 0.0
    %376 = vmatpush1.msra.mxu0 0.0
    %377 = vmatprep.subr.mxu0 0.0
    %378 = vmatpush1.msra.mxu0 0.0
    %379 = vmatprep.subr.mxu0 0.0
    %380 = vmatpush1.msra.mxu0 0.0
    %381 = vmatprep.subr.mxu0 0.0
    %382 = vmatpush1.msra.mxu0 0.0
    %383 = vmatprep.subr.mxu0 0.0
    %384 = vmatpush1.msra.mxu0 0.0
    %385 = vmatprep.subr.mxu0 0.0
    %386 = vmatpush1.msra.mxu0 0.0
    %387 = vmatprep.subr.mxu0 0.0
    %388 = vmatpush1.msra.mxu0 0.0
    %389 = vmatprep.subr.mxu0 0.0
    %390 = vmatpush1.msra.mxu0 0.0
    %391 = vmatprep.subr.mxu0 0.0
    %392 = vmatpush1.msra.mxu0 0.0
    %393 = vmatprep.subr.mxu0 0.0
    %394 = vmatpush1.msra.mxu0 0.0
    %395 = vmatprep.subr.mxu0 0.0
    %396 = vmatpush1.msra.mxu0 0.0
    %397 = vmatprep.subr.mxu0 0.0
    %398 = vmatpush1.msra.mxu0 0.0
    %399 = vmatprep.subr.mxu0 0.0
    %400 = vmatpush1.msra.mxu0 0.0
    %401 = vmatprep.subr.mxu0 0.0
    %402 = vmatpush1.msra.mxu0 0.0
    %403 = vmatprep.subr.mxu0 0.0
    %404 = vmatpush1.msra.mxu0 0.0
    %405 = vmatprep.subr.mxu0 0.0
    %406 = vmatpush1.msra.mxu0 0.0
    %407 = vmatprep.subr.mxu0 0.0
    %408 = vmatpush1.msra.mxu0 0.0
    %409 = vmatprep.subr.mxu0 0.0
    %410 = vmatpush1.msra.mxu0 0.0
    %411 = vmatprep.subr.mxu0 0.0
    %412 = vmatpush1.msra.mxu0 0.0
    %413 = vmatprep.subr.mxu0 0.0
    %414 = vmatpush1.msra.mxu0 0.0
    %415 = vmatprep.mubr.f32.mxu0 0.0
    %416 = vmatmul.mubr.f32.gmra.mrb[0].mxu0 %v349
    %v417 = vpop.f32.mrb[0].mxu0
    %v418 = vadd.f32 0.0, %v417
    %v419 = vpop.f32.mrb[0].mxu0
    %420 = vdwg.mxu0
    %v421 = vadd.f32 %v348, %v418
    %v422 = vxor.u32 %v421, 2147483648
    %v423 = vmul.f32 %v422, 1.442695
    %v424 = vpow.pop %v423
    %v425 = vadd.f32 %v424, 1.0
    %v426 = vrcp.pop %v425
    %v427 = vmul.f32 1.0, %v426
    %v428 = vtanh.pop %v421
    %v429 = vmul.f32 %v427, %v334
    %431 = vrot.lane.b32.xlu0 %v428, 64
    %v432 = vpop.permute.xlu0 %431
    %v434 = vmul.f32 %v427, %v432
    %436 = vrot.lane.b32.xlu0 %v434, 32
    %v437 = vpop.permute.xlu0 %436
    %v439 = vadd.f32 %v429, %v437
    %v440 = vtanh.pop %v439
    %442 = vrot.lane.b32.xlu0 %v440, 64
    %v443 = vpop.permute.xlu0 %442
    %v445 = vmul.f32 %v427, %v443
    %447 = vrot.lane.b32.xlu0 %v445, 32
    %v448 = vpop.permute.xlu0 %447
    %s450 = scalar_lea.vmem %s4, 24
    %451 = vst.msk [vmem:[%s450] sm:$0xff] %vm29, %v448
    %s452 = scalar_lea.vmem %s0, 32
    %v453 = vld [vmem:[%s452] sm:$0xff]
    %v454 = vsel %vm29, %v448, 0
    %456 = vmatprep.subr.mxu0 0.0
    %457 = vmatpush1.msra.mxu0 %v22
    %458 = vmatprep.subr.mxu0 0.0
    %459 = vmatpush1.msra.mxu0 %v23
    %460 = vmatprep.subr.mxu0 0.0
    %461 = vmatpush1.msra.mxu0 %v24
    %462 = vmatprep.subr.mxu0 0.0
    %463 = vmatpush1.msra.mxu0 %v25
    %464 = vmatprep.subr.mxu0 0.0
    %465 = vmatpush1.msra.mxu0 0.0
    %466 = vmatprep.subr.mxu0 0.0
    %467 = vmatpush1.msra.mxu0 0.0
    %468 = vmatprep.subr.mxu0 0.0
    %469 = vmatpush1.msra.mxu0 0.0
    %470 = vmatprep.subr.mxu0 0.0
    %471 = vmatpush1.msra.mxu0 0.0
    %472 = vmatprep.subr.mxu0 0.0
    %473 = vmatpush1.msra.mxu0 0.0
    %474 = vmatprep.subr.mxu0 0.0
    %475 = vmatpush1.msra.mxu0 0.0
    %476 = vmatprep.subr.mxu0 0.0
    %477 = vmatpush1.msra.mxu0 0.0
    %478 = vmatprep.subr.mxu0 0.0
    %479 = vmatpush1.msra.mxu0 0.0
    %480 = vmatprep.subr.mxu0 0.0
    %481 = vmatpush1.msra.mxu0 0.0
    %482 = vmatprep.subr.mxu0 0.0
    %483 = vmatpush1.msra.mxu0 0.0
    %484 = vmatprep.subr.mxu0 0.0
    %485 = vmatpush1.msra.mxu0 0.0
    %486 = vmatprep.subr.mxu0 0.0
    %487 = vmatpush1.msra.mxu0 0.0
    %488 = vmatprep.subr.mxu0 0.0
    %489 = vmatpush1.msra.mxu0 0.0
    %490 = vmatprep.subr.mxu0 0.0
    %491 = vmatpush1.msra.mxu0 0.0
    %492 = vmatprep.subr.mxu0 0.0
    %493 = vmatpush1.msra.mxu0 0.0
    %494 = vmatprep.subr.mxu0 0.0
    %495 = vmatpush1.msra.mxu0 0.0
    %496 = vmatprep.subr.mxu0 0.0
    %497 = vmatpush1.msra.mxu0 0.0
    %498 = vmatprep.subr.mxu0 0.0
    %499 = vmatpush1.msra.mxu0 0.0
    %500 = vmatprep.subr.mxu0 0.0
    %501 = vmatpush1.msra.mxu0 0.0
    %502 = vmatprep.subr.mxu0 0.0
    %503 = vmatpush1.msra.mxu0 0.0
    %504 = vmatprep.subr.mxu0 0.0
    %505 = vmatpush1.msra.mxu0 0.0
    %506 = vmatprep.subr.mxu0 0.0
    %507 = vmatpush1.msra.mxu0 0.0
    %508 = vmatprep.subr.mxu0 0.0
    %509 = vmatpush1.msra.mxu0 0.0
    %510 = vmatprep.subr.mxu0 0.0
    %511 = vmatpush1.msra.mxu0 0.0
    %512 = vmatprep.subr.mxu0 0.0
    %513 = vmatpush1.msra.mxu0 0.0
    %514 = vmatprep.subr.mxu0 0.0
    %515 = vmatpush1.msra.mxu0 0.0
    %516 = vmatprep.subr.mxu0 0.0
    %517 = vmatpush1.msra.mxu0 0.0
    %518 = vmatprep.subr.mxu0 0.0
    %519 = vmatpush1.msra.mxu0 0.0
    %520 = vmatprep.mubr.f32.mxu0 0.0
    %521 = vmatmul.mubr.f32.gmra.mrb[0].mxu0 %v454
    %v522 = vpop.f32.mrb[0].mxu0
    %v523 = vadd.f32 0.0, %v522
    %v524 = vpop.f32.mrb[0].mxu0
    %525 = vdwg.mxu0
    %v526 = vadd.f32 %v453, %v523
    %v527 = vxor.u32 %v526, 2147483648
    %v528 = vmul.f32 %v527, 1.442695
    %v529 = vpow.pop %v528
    %v530 = vadd.f32 %v529, 1.0
    %v531 = vrcp.pop %v530
    %v532 = vmul.f32 1.0, %v531
    %v533 = vtanh.pop %v526
    %v534 = vmul.f32 %v532, %v439
    %536 = vrot.lane.b32.xlu0 %v533, 64
    %v537 = vpop.permute.xlu0 %536
    %v539 = vmul.f32 %v532, %v537
    %541 = vrot.lane.b32.xlu0 %v539, 32
    %v542 = vpop.permute.xlu0 %541
    %v544 = vadd.f32 %v534, %v542
    %v545 = vtanh.pop %v544
    %547 = vrot.lane.b32.xlu0 %v545, 64
    %v548 = vpop.permute.xlu0 %547
    %v550 = vmul.f32 %v532, %v548
    %552 = vrot.lane.b32.xlu0 %v550, 32
    %v553 = vpop.permute.xlu0 %552
    %s555 = scalar_lea.vmem %s4, 32
    %556 = vst.msk [vmem:[%s555] sm:$0xff] %vm29, %v553
    %s557 = scalar_lea.vmem %s0, 40
    %v558 = vld [vmem:[%s557] sm:$0xff]
    %v559 = vsel %vm29, %v553, 0
    %561 = vmatprep.subr.mxu0 0.0
    %562 = vmatpush1.msra.mxu0 %v22
    %563 = vmatprep.subr.mxu0 0.0
    %564 = vmatpush1.msra.mxu0 %v23
    %565 = vmatprep.subr.mxu0 0.0
    %566 = vmatpush1.msra.mxu0 %v24
    %567 = vmatprep.subr.mxu0 0.0
    %568 = vmatpush1.msra.mxu0 %v25
    %569 = vmatprep.subr.mxu0 0.0
    %570 = vmatpush1.msra.mxu0 0.0
    %571 = vmatprep.subr.mxu0 0.0
    %572 = vmatpush1.msra.mxu0 0.0
    %573 = vmatprep.subr.mxu0 0.0
    %574 = vmatpush1.msra.mxu0 0.0
    %575 = vmatprep.subr.mxu0 0.0
    %576 = vmatpush1.msra.mxu0 0.0
    %577 = vmatprep.subr.mxu0 0.0
    %578 = vmatpush1.msra.mxu0 0.0
    %579 = vmatprep.subr.mxu0 0.0
    %580 = vmatpush1.msra.mxu0 0.0
    %581 = vmatprep.subr.mxu0 0.0
    %582 = vmatpush1.msra.mxu0 0.0
    %583 = vmatprep.subr.mxu0 0.0
    %584 = vmatpush1.msra.mxu0 0.0
    %585 = vmatprep.subr.mxu0 0.0
    %586 = vmatpush1.msra.mxu0 0.0
    %587 = vmatprep.subr.mxu0 0.0
    %588 = vmatpush1.msra.mxu0 0.0
    %589 = vmatprep.subr.mxu0 0.0
    %590 = vmatpush1.msra.mxu0 0.0
    %591 = vmatprep.subr.mxu0 0.0
    %592 = vmatpush1.msra.mxu0 0.0
    %593 = vmatprep.subr.mxu0 0.0
    %594 = vmatpush1.msra.mxu0 0.0
    %595 = vmatprep.subr.mxu0 0.0
    %596 = vmatpush1.msra.mxu0 0.0
    %597 = vmatprep.subr.mxu0 0.0
    %598 = vmatpush1.msra.mxu0 0.0
    %599 = vmatprep.subr.mxu0 0.0
    %600 = vmatpush1.msra.mxu0 0.0
    %601 = vmatprep.subr.mxu0 0.0
    %602 = vmatpush1.msra.mxu0 0.0
    %603 = vmatprep.subr.mxu0 0.0
    %604 = vmatpush1.msra.mxu0 0.0
    %605 = vmatprep.subr.mxu0 0.0
    %606 = vmatpush1.msra.mxu0 0.0
    %607 = vmatprep.subr.mxu0 0.0
    %608 = vmatpush1.msra.mxu0 0.0
    %609 = vmatprep.subr.mxu0 0.0
    %610 = vmatpush1.msra.mxu0 0.0
    %611 = vmatprep.subr.mxu0 0.0
    %612 = vmatpush1.msra.mxu0 0.0
    %613 = vmatprep.subr.mxu0 0.0
    %614 = vmatpush1.msra.mxu0 0.0
    %615 = vmatprep.subr.mxu0 0.0
    %616 = vmatpush1.msra.mxu0 0.0
    %617 = vmatprep.subr.mxu0 0.0
    %618 = vmatpush1.msra.mxu0 0.0
    %619 = vmatprep.subr.mxu0 0.0
    %620 = vmatpush1.msra.mxu0 0.0
    %621 = vmatprep.subr.mxu0 0.0
    %622 = vmatpush1.msra.mxu0 0.0
    %623 = vmatprep.subr.mxu0 0.0
    %624 = vmatpush1.msra.mxu0 0.0
    %625 = vmatprep.mubr.f32.mxu0 0.0
    %626 = vmatmul.mubr.f32.gmra.mrb[0].mxu0 %v559
    %v627 = vpop.f32.mrb[0].mxu0
    %v628 = vadd.f32 0.0, %v627
    %v629 = vpop.f32.mrb[0].mxu0
    %630 = vdwg.mxu0
    %v631 = vadd.f32 %v558, %v628
    %v632 = vxor.u32 %v631, 2147483648
    %v633 = vmul.f32 %v632, 1.442695
    %v634 = vpow.pop %v633
    %v635 = vadd.f32 %v634, 1.0
    %v636 = vrcp.pop %v635
    %v637 = vmul.f32 1.0, %v636
    %v638 = vtanh.pop %v631
    %v639 = vmul.f32 %v637, %v544
    %641 = vrot.lane.b32.xlu0 %v638, 64
    %v642 = vpop.permute.xlu0 %641
    %v644 = vmul.f32 %v637, %v642
    %646 = vrot.lane.b32.xlu0 %v644, 32
    %v647 = vpop.permute.xlu0 %646
    %v649 = vadd.f32 %v639, %v647
    %v650 = vtanh.pop %v649
    %652 = vrot.lane.b32.xlu0 %v650, 64
    %v653 = vpop.permute.xlu0 %652
    %v655 = vmul.f32 %v637, %v653
    %657 = vrot.lane.b32.xlu0 %v655, 32
    %v658 = vpop.permute.xlu0 %657
    %s660 = scalar_lea.vmem %s4, 40
    %661 = vst.msk [vmem:[%s660] sm:$0xff] %vm29, %v658
    %s662 = scalar_lea.vmem %s0, 48
    %v663 = vld [vmem:[%s662] sm:$0xff]
    %v664 = vsel %vm29, %v658, 0
    %666 = vmatprep.subr.mxu0 0.0
    %667 = vmatpush1.msra.mxu0 %v22
    %668 = vmatprep.subr.mxu0 0.0
    %669 = vmatpush1.msra.mxu0 %v23
    %670 = vmatprep.subr.mxu0 0.0
    %671 = vmatpush1.msra.mxu0 %v24
    %672 = vmatprep.subr.mxu0 0.0
    %673 = vmatpush1.msra.mxu0 %v25
    %674 = vmatprep.subr.mxu0 0.0
    %675 = vmatpush1.msra.mxu0 0.0
    %676 = vmatprep.subr.mxu0 0.0
    %677 = vmatpush1.msra.mxu0 0.0
    %678 = vmatprep.subr.mxu0 0.0
    %679 = vmatpush1.msra.mxu0 0.0
    %680 = vmatprep.subr.mxu0 0.0
    %681 = vmatpush1.msra.mxu0 0.0
    %682 = vmatprep.subr.mxu0 0.0
    %683 = vmatpush1.msra.mxu0 0.0
    %684 = vmatprep.subr.mxu0 0.0
    %685 = vmatpush1.msra.mxu0 0.0
    %686 = vmatprep.subr.mxu0 0.0
    %687 = vmatpush1.msra.mxu0 0.0
    %688 = vmatprep.subr.mxu0 0.0
    %689 = vmatpush1.msra.mxu0 0.0
    %690 = vmatprep.subr.mxu0 0.0
    %691 = vmatpush1.msra.mxu0 0.0
    %692 = vmatprep.subr.mxu0 0.0
    %693 = vmatpush1.msra.mxu0 0.0
    %694 = vmatprep.subr.mxu0 0.0
    %695 = vmatpush1.msra.mxu0 0.0
    %696 = vmatprep.subr.mxu0 0.0
    %697 = vmatpush1.msra.mxu0 0.0
    %698 = vmatprep.subr.mxu0 0.0
    %699 = vmatpush1.msra.mxu0 0.0
    %700 = vmatprep.subr.mxu0 0.0
    %701 = vmatpush1.msra.mxu0 0.0
    %702 = vmatprep.subr.mxu0 0.0
    %703 = vmatpush1.msra.mxu0 0.0
    %704 = vmatprep.subr.mxu0 0.0
    %705 = vmatpush1.msra.mxu0 0.0
    %706 = vmatprep.subr.mxu0 0.0
    %707 = vmatpush1.msra.mxu0 0.0
    %708 = vmatprep.subr.mxu0 0.0
    %709 = vmatpush1.msra.mxu0 0.0
    %710 = vmatprep.subr.mxu0 0.0
    %711 = vmatpush1.msra.mxu0 0.0
    %712 = vmatprep.subr.mxu0 0.0
    %713 = vmatpush1.msra.mxu0 0.0
    %714 = vmatprep.subr.mxu0 0.0
    %715 = vmatpush1.msra.mxu0 0.0
    %716 = vmatprep.subr.mxu0 0.0
    %717 = vmatpush1.msra.mxu0 0.0
    %718 = vmatprep.subr.mxu0 0.0
    %719 = vmatpush1.msra.mxu0 0.0
    %720 = vmatprep.subr.mxu0 0.0
    %721 = vmatpush1.msra.mxu0 0.0
    %722 = vmatprep.subr.mxu0 0.0
    %723 = vmatpush1.msra.mxu0 0.0
    %724 = vmatprep.subr.mxu0 0.0
    %725 = vmatpush1.msra.mxu0 0.0
    %726 = vmatprep.subr.mxu0 0.0
    %727 = vmatpush1.msra.mxu0 0.0
    %728 = vmatprep.subr.mxu0 0.0
    %729 = vmatpush1.msra.mxu0 0.0
    %730 = vmatprep.mubr.f32.mxu0 0.0
    %731 = vmatmul.mubr.f32.gmra.mrb[0].mxu0 %v664
    %v732 = vpop.f32.mrb[0].mxu0
    %v733 = vadd.f32 0.0, %v732
    %v734 = vpop.f32.mrb[0].mxu0
    %735 = vdwg.mxu0
    %v736 = vadd.f32 %v663, %v733
    %v737 = vxor.u32 %v736, 2147483648
    %v738 = vmul.f32 %v737, 1.442695
    %v739 = vpow.pop %v738
    %v740 = vadd.f32 %v739, 1.0
    %v741 = vrcp.pop %v740
    %v742 = vmul.f32 1.0, %v741
    %v743 = vtanh.pop %v736
    %v744 = vmul.f32 %v742, %v649
    %746 = vrot.lane.b32.xlu0 %v743, 64
    %v747 = vpop.permute.xlu0 %746
    %v749 = vmul.f32 %v742, %v747
    %751 = vrot.lane.b32.xlu0 %v749, 32
    %v752 = vpop.permute.xlu0 %751
    %v754 = vadd.f32 %v744, %v752
    %v755 = vtanh.pop %v754
    %757 = vrot.lane.b32.xlu0 %v755, 64
    %v758 = vpop.permute.xlu0 %757
    %v760 = vmul.f32 %v742, %v758
    %762 = vrot.lane.b32.xlu0 %v760, 32
    %v763 = vpop.permute.xlu0 %762
    %s765 = scalar_lea.vmem %s4, 48
    %766 = vst.msk [vmem:[%s765] sm:$0xff] %vm29, %v763
    %s767 = scalar_lea.vmem %s0, 56
    %v768 = vld [vmem:[%s767] sm:$0xff]
    %v769 = vsel %vm29, %v763, 0
    %771 = vmatprep.subr.mxu0 0.0
    %772 = vmatpush1.msra.mxu0 %v22
    %773 = vmatprep.subr.mxu0 0.0
    %774 = vmatpush1.msra.mxu0 %v23
    %775 = vmatprep.subr.mxu0 0.0
    %776 = vmatpush1.msra.mxu0 %v24
    %777 = vmatprep.subr.mxu0 0.0
    %778 = vmatpush1.msra.mxu0 %v25
    %779 = vmatprep.subr.mxu0 0.0
    %780 = vmatpush1.msra.mxu0 0.0
    %781 = vmatprep.subr.mxu0 0.0
    %782 = vmatpush1.msra.mxu0 0.0
    %783 = vmatprep.subr.mxu0 0.0
    %784 = vmatpush1.msra.mxu0 0.0
    %785 = vmatprep.subr.mxu0 0.0
    %786 = vmatpush1.msra.mxu0 0.0
    %787 = vmatprep.subr.mxu0 0.0
    %788 = vmatpush1.msra.mxu0 0.0
    %789 = vmatprep.subr.mxu0 0.0
    %790 = vmatpush1.msra.mxu0 0.0
    %791 = vmatprep.subr.mxu0 0.0
    %792 = vmatpush1.msra.mxu0 0.0
    %793 = vmatprep.subr.mxu0 0.0
    %794 = vmatpush1.msra.mxu0 0.0
    %795 = vmatprep.subr.mxu0 0.0
    %796 = vmatpush1.msra.mxu0 0.0
    %797 = vmatprep.subr.mxu0 0.0
    %798 = vmatpush1.msra.mxu0 0.0
    %799 = vmatprep.subr.mxu0 0.0
    %800 = vmatpush1.msra.mxu0 0.0
    %801 = vmatprep.subr.mxu0 0.0
    %802 = vmatpush1.msra.mxu0 0.0
    %803 = vmatprep.subr.mxu0 0.0
    %804 = vmatpush1.msra.mxu0 0.0
    %805 = vmatprep.subr.mxu0 0.0
    %806 = vmatpush1.msra.mxu0 0.0
    %807 = vmatprep.subr.mxu0 0.0
    %808 = vmatpush1.msra.mxu0 0.0
    %809 = vmatprep.subr.mxu0 0.0
    %810 = vmatpush1.msra.mxu0 0.0
    %811 = vmatprep.subr.mxu0 0.0
    %812 = vmatpush1.msra.mxu0 0.0
    %813 = vmatprep.subr.mxu0 0.0
    %814 = vmatpush1.msra.mxu0 0.0
    %815 = vmatprep.subr.mxu0 0.0
    %816 = vmatpush1.msra.mxu0 0.0
    %817 = vmatprep.subr.mxu0 0.0
    %818 = vmatpush1.msra.mxu0 0.0
    %819 = vmatprep.subr.mxu0 0.0
    %820 = vmatpush1.msra.mxu0 0.0
    %821 = vmatprep.subr.mxu0 0.0
    %822 = vmatpush1.msra.mxu0 0.0
    %823 = vmatprep.subr.mxu0 0.0
    %824 = vmatpush1.msra.mxu0 0.0
    %825 = vmatprep.subr.mxu0 0.0
    %826 = vmatpush1.msra.mxu0 0.0
    %827 = vmatprep.subr.mxu0 0.0
    %828 = vmatpush1.msra.mxu0 0.0
    %829 = vmatprep.subr.mxu0 0.0
    %830 = vmatpush1.msra.mxu0 0.0
    %831 = vmatprep.subr.mxu0 0.0
    %832 = vmatpush1.msra.mxu0 0.0
    %833 = vmatprep.subr.mxu0 0.0
    %834 = vmatpush1.msra.mxu0 0.0
    %835 = vmatprep.mubr.f32.mxu0 0.0
    %836 = vmatmul.mubr.f32.gmra.mrb[0].mxu0 %v769
    %v837 = vpop.f32.mrb[0].mxu0
    %v838 = vadd.f32 0.0, %v837
    %v839 = vpop.f32.mrb[0].mxu0
    %840 = vdwg.mxu0
    %v841 = vadd.f32 %v768, %v838
    %v842 = vxor.u32 %v841, 2147483648
    %v843 = vmul.f32 %v842, 1.442695
    %v844 = vpow.pop %v843
    %v845 = vadd.f32 %v844, 1.0
    %v846 = vrcp.pop %v845
    %v847 = vmul.f32 1.0, %v846
    %v848 = vtanh.pop %v841
    %v849 = vmul.f32 %v847, %v754
    %851 = vrot.lane.b32.xlu0 %v848, 64
    %v852 = vpop.permute.xlu0 %851
    %v854 = vmul.f32 %v847, %v852
    %856 = vrot.lane.b32.xlu0 %v854, 32
    %v857 = vpop.permute.xlu0 %856
    %v859 = vadd.f32 %v849, %v857
    %v860 = vtanh.pop %v859
    %862 = vrot.lane.b32.xlu0 %v860, 64
    %v863 = vpop.permute.xlu0 %862
    %v865 = vmul.f32 %v847, %v863
    %867 = vrot.lane.b32.xlu0 %v865, 32
    %v868 = vpop.permute.xlu0 %867
    %s870 = scalar_lea.vmem %s4, 56
    %871 = vst.msk [vmem:[%s870] sm:$0xff] %vm29, %v868
    %872 = vst.msk [vmem:[#allocation2] sm:$0xff] %vm29, %v868
    %874 = vrot.lane.b32.xlu0 %v859, 96
    %v875 = vpop.permute.xlu0 %874
    %877 = vst.msk [vmem:[#allocation4] sm:$0xff] %vm29, %v875
    // Predicated region
    $region18: #{pencoder_forward.1} parent=1 // pred_check
      _
    $region19: #{pencoder_forward.1} parent=1 // pred_check_branch
      %879 = sbr.rel (0) target = $region21
    $region20: #{pencoder_forward.1} parent=1 // pred_region
      _
    $region21: #{pencoder_forward.1} parent=1 // pred_fallthru
      _
    // Predicated region
    $region22: #{pencoder_forward.1} parent=1 // pred_check
      _
    $region23: #{pencoder_forward.1} parent=1 // pred_check_branch
      %881 = sbr.rel (0) target = $region25
    $region24: #{pencoder_forward.1} parent=1 // pred_region
      %s883 = ssub.s32 128, 128
      %884 = vsyncadd [#allocation3], %s883
      %s886 = sshll.u32 [#allocation2], 4
      %s887 = int_to_ptr.vmem [resolvable:$true] %s886
      %889 = dma.vmem_to_hbm [thread:$0]  %s887, 128, %s5, [#allocation3]
    $region25: #{pencoder_forward.1} parent=1 // pred_fallthru
      _
    // Predicated region
    $region26: #{pencoder_forward.1} parent=1 // pred_check
      _
    $region27: #{pencoder_forward.1} parent=1 // pred_check_branch
      %891 = sbr.rel (0) target = $region29
    $region28: #{pencoder_forward.1} parent=1 // pred_region
      %s893 = ssub.s32 128, 128
      %894 = vsyncadd [#allocation5], %s893
      %s896 = sshll.u32 [#allocation4], 4
      %s897 = int_to_ptr.vmem [resolvable:$true] %s896
      %899 = dma.vmem_to_hbm [thread:$0]  %s897, 128, %s6, [#allocation5]
    $region29: #{pencoder_forward.1} parent=1 // pred_fallthru
      _
    // Predicated region
    $region30: #{pencoder_forward.1} parent=1 // pred_check
      _
    $region31: #{pencoder_forward.1} parent=1 // pred_check_branch
      %901 = sbr.rel (0) target = $region33
    $region32: #{pencoder_forward.1} parent=1 // pred_region
      _
    $region33: #{pencoder_forward.1} parent=1 // pred_fallthru
      _
    // Predicated region
    $region34: #{pencoder_forward.1} parent=1 // pred_check
      _
    $region35: #{pencoder_forward.1} parent=1 // pred_check_branch
      %903 = sbr.rel (0) target = $region37
    $region36: #{pencoder_forward.1} parent=1 // pred_region
      %904 = dma.done [#allocation3], 128
    $region37: #{pencoder_forward.1} parent=1 // pred_fallthru
      _
    // Predicated region
    $region38: #{pencoder_forward.1} parent=1 // pred_check
      _
    $region39: #{pencoder_forward.1} parent=1 // pred_check_branch
      %906 = sbr.rel (0) target = $region41
    $region40: #{pencoder_forward.1} parent=1 // pred_region
      %907 = dma.done [#allocation5], 128
    $region41: #{pencoder_forward.1} parent=1 // pred_fallthru
      _
    %908 = vsyncpa [#allocation3], 1
    %909 = vsyncpa [#allocation5], 1

</llo_original>
